<compile_context>
chip_gen: v5e
topology: v5e:2x2
jax: 0.10.0
libtpu: 0.0.40
codegen_flags: <defaults>
</compile_context>

<pallas_src>
import jax
import jax.numpy as jnp
from jax import lax
from jax.experimental import pallas as pl
from jax.experimental.pallas import tpu as pltpu


def _conv1d_kernel(x_ref, w_ref, b_ref, o_ref):
    """One grid step: B_tile full-length (C_pad, L) slabs.

    x_ref: (B_tile, C_pad, L)   unpadded input slab
    w_ref: (3, C_pad, C_pad)    w_ref[k] = weight[:, :, k]; constant index_map -> VMEM-resident
    b_ref: (C_pad, 1)           bias (f32), added on the VPU in the epilogue
    o_ref: (B_tile, C_pad, L)   output slab
    """
    b_tile, c_pad, L = o_ref.shape

    w0 = w_ref[0]          # tap paired with x[:, l-1]
    w1 = w_ref[1]          # tap paired with x[:, l]
    w2 = w_ref[2]          # tap paired with x[:, l+1]
    bias = b_ref[...]      # (C_pad, 1) -> lane-broadcast add

    # Edge masks for the in-kernel halo.  L is static, so these fold to constants and
    # are hoisted out of the unrolled batch loop (no per-iteration iota/compare work).
    lane = lax.broadcasted_iota(jnp.int32, (c_pad, L), 1)
    not_first = lane != 0
    not_last = lane != (L - 1)

    def body(b, carry):
        x = x_ref[b]                                                   # (C_pad, L)
        zero = jnp.zeros_like(x)
        # Halo columns rebuilt with an XLU lane rotate + mask (no padded HBM copy):
        #   x_left[:, l]  = x[:, l-1]  (0 at l == 0)
        #   x_right[:, l] = x[:, l+1]  (0 at l == L-1)
        x_left = jnp.where(not_first, pltpu.roll(x, shift=1, axis=1), zero)
        x_right = jnp.where(not_last, pltpu.roll(x, shift=L - 1, axis=1), zero)

        # Three accumulating MXU dots into a single f32 accumulator (no concat: x is
        # not triplicated in VMEM and the contraction K stays at C_pad).
        acc = jnp.dot(w1, x, preferred_element_type=jnp.float32)
        acc = acc + jnp.dot(w0, x_left, preferred_element_type=jnp.float32)
        acc = acc + jnp.dot(w2, x_right, preferred_element_type=jnp.float32)

        # Bias is a cheap VPU broadcast-add in the epilogue.
        o_ref[b] = (acc + bias).astype(o_ref.dtype)
        return carry

    # Amortize the ~600-cycle per-grid-step overhead over B_tile batch elements.
    lax.fori_loop(0, b_tile, body, 0, unroll=True)


def _pick_batch_tile(n, c_pad, length, itemsize):
    """Largest batch tile that (a) leaves >=2 grid steps when n >= 2 (keeps both v7x
    TensorCores busy) and (b) keeps the double-buffered in+out blocks under a VMEM
    budget that is safe for v7x's 64 MiB physical / 32 MiB default scoped limit."""
    budget = 24 << 20                                   # conservative per-step budget
    per_batch = 4 * c_pad * length * itemsize           # 2x in + 2x out (double-buffered)
    cap = max(1, budget // per_batch)
    target = max(1, n // 2) if n >= 2 else 1            # >=2 'parallel' steps for v7x
    bt = max(1, min(target, cap, n))
    while n % bt:                                        # grid must tile the batch exactly
        bt -= 1
    return bt


def conv_channels_pallas(x, weight, bias, *, use_bf16=False):
    """nn.Conv1d(C, C, kernel_size=3, padding=1) over NCL input, as a Pallas kernel.

    x: (N, C, L); weight: (C_out, C_in, 3); bias: (C,). Returns (N, C, L) in x.dtype.
    use_bf16: cast x/weights to bf16 for the DMA/MXU path (f32 accumulation kept).
              Roughly halves HBM traffic on v6e/v7x but won't hold 1e-5 f32 parity.
    """
    n, c, length = x.shape
    assert weight.shape == (c, c, 3) and bias.shape == (c,)

    # Pad channels to a multiple of 8 so (C_pad, L) blocks stay (8,128)-tile aligned
    # for any num_heads (zero channel rows in x, zero rows/cols in the weights).
    c_pad = ((c + 7) // 8) * 8
    compute_dtype = jnp.bfloat16 if use_bf16 else x.dtype

    if c_pad != c:
        x_p = jnp.pad(x, ((0, 0), (0, c_pad - c), (0, 0)))
        w_p = jnp.pad(weight, ((0, c_pad - c), (0, c_pad - c), (0, 0)))
        b_p = jnp.pad(bias, (0, c_pad - c))
    else:
        x_p, w_p, b_p = x, weight, bias

    x_p = x_p.astype(compute_dtype)
    w3 = jnp.transpose(w_p, (2, 0, 1)).astype(compute_dtype)   # (3, C_pad, C_pad)
    b2 = b_p[:, None].astype(jnp.float32)                      # (C_pad, 1), f32 epilogue add

    itemsize = jnp.dtype(compute_dtype).itemsize
    b_tile = _pick_batch_tile(n, c_pad, length, itemsize)
    grid = (n // b_tile,)

    # TODO(synk): for very large L, additionally tile the L axis in >=512-lane blocks
    # (handling the one-column halo between tiles) and raise vmem_limit_bytes if needed.
    out = pl.pallas_call(
        _conv1d_kernel,
        out_shape=jax.ShapeDtypeStruct((n, c_pad, length), x.dtype),
        grid=grid,
        in_specs=[
            pl.BlockSpec((b_tile, c_pad, length), lambda g: (g, 0, 0)),
            pl.BlockSpec((3, c_pad, c_pad), lambda g: (0, 0, 0)),   # constant -> DMA'd once
            pl.BlockSpec((c_pad, 1), lambda g: (0, 0)),             # constant -> DMA'd once
        ],
        out_specs=pl.BlockSpec((b_tile, c_pad, length), lambda g: (g, 0, 0)),
        compiler_params=pltpu.CompilerParams(
            dimension_semantics=("parallel",)),
    )(x_p, w3, b2)

    if c_pad != c:
        out = out[:, :c, :]
    return out


def _reference_conv1d(x, weight, bias):
    # lax conv reference, NCL layout == NCW with spatial dim W.
    out = lax.conv_general_dilated(
        x, weight,
        window_strides=(1,), padding=((1, 1),),
        dimension_numbers=("NCH", "OIH", "NCH"))
    return out + bias[None, :, None]


if __name__ == "__main__":
    num_heads = 8    # C
    L = 512          # sequence/feature length (lane-dense multiple of 128; >=512 lanes/dot)
    N = 4            # batch -> B_tile=2, grid=(2,) parallel steps (both v7x TCs busy)

    key = jax.random.PRNGKey(0)
    kx, kw, kb = jax.random.split(key, 3)

    # Deterministic parameter init (Conv1d default: U(-b, b), b = 1/sqrt(C*ksize))
    bound = 1.0 / jnp.sqrt(num_heads * 3.0)
    weight = jax.random.uniform(kw, (num_heads, num_heads, 3), jnp.float32,
                                -bound, bound)
    bias = jax.random.uniform(kb, (num_heads,), jnp.float32, -bound, bound)

    x = jax.random.normal(kx, (N, num_heads, L), jnp.float32)

    out = conv_channels_pallas(x, weight, bias)
    out = jax.block_until_ready(out)

    ref = _reference_conv1d(x, weight, bias)
    assert out.shape == (N, num_heads, L)
    assert jnp.allclose(out, ref, atol=1e-5, rtol=1e-5), "mismatch vs lax.conv reference"

    print("KERNEL_OK")
</pallas_src>

<mosaic_0001>
module attributes {stable_mosaic.version = 11 : i64} {
  func.func @_conv1d_kernel(%arg0: i32, %arg1: memref<2x8x512xf32, #tpu.memory_space<vmem>>, %arg2: memref<3x8x8xf32, #tpu.memory_space<vmem>>, %arg3: memref<8x1xf32, #tpu.memory_space<vmem>>, %arg4: memref<2x8x512xf32, #tpu.memory_space<vmem>>) attributes {dimension_semantics = [#tpu.dimension_semantics<parallel>], iteration_bounds = array<i64: 2>, scalar_prefetch = 0 : i64, scratch_operands = 0 : i64, tpu.core_type = #tpu.core_type<tc>, window_params = [{transform_indices = @transform_0, window_bounds = array<i64: 2, 8, 512>}, {pipeline_mode = #tpu.pipeline_mode<synchronous>, transform_indices = @transform_1, window_bounds = array<i64: 3, 8, 8>}, {pipeline_mode = #tpu.pipeline_mode<synchronous>, transform_indices = @transform_2, window_bounds = array<i64: 8, 1>}, {transform_indices = @transform_3, window_bounds = array<i64: 2, 8, 512>}]} {
    %c0 = arith.constant 0 : index
    %c0_0 = arith.constant 0 : index
    %c0_1 = arith.constant 0 : index
    %0 = vector.load %arg2[%c0, %c0_0, %c0_1] : memref<3x8x8xf32, #tpu.memory_space<vmem>>, vector<1x8x8xf32>
    %1 = vector.shape_cast %0 : vector<1x8x8xf32> to vector<8x8xf32>
    %c1 = arith.constant 1 : index
    %c0_2 = arith.constant 0 : index
    %c0_3 = arith.constant 0 : index
    %2 = vector.load %arg2[%c1, %c0_2, %c0_3] : memref<3x8x8xf32, #tpu.memory_space<vmem>>, vector<1x8x8xf32>
    %3 = vector.shape_cast %2 : vector<1x8x8xf32> to vector<8x8xf32>
    %c2 = arith.constant 2 : index
    %c0_4 = arith.constant 0 : index
    %c0_5 = arith.constant 0 : index
    %4 = vector.load %arg2[%c2, %c0_4, %c0_5] : memref<3x8x8xf32, #tpu.memory_space<vmem>>, vector<1x8x8xf32>
    %5 = vector.shape_cast %4 : vector<1x8x8xf32> to vector<8x8xf32>
    %c0_6 = arith.constant 0 : index
    %c0_7 = arith.constant 0 : index
    %6 = vector.load %arg3[%c0_6, %c0_7] : memref<8x1xf32, #tpu.memory_space<vmem>>, vector<8x1xf32>
    %7 = tpu.iota {dimensions = array<i32: 1>} : vector<8x512xi32>
    %c0_i32 = arith.constant 0 : i32
    %8 = vector.broadcast %c0_i32 : i32 to vector<8x512xi32>
    %9 = arith.cmpi ne, %7, %8 : vector<8x512xi32>
    %c511_i32 = arith.constant 511 : i32
    %10 = vector.broadcast %c511_i32 : i32 to vector<8x512xi32>
    %11 = arith.cmpi ne, %7, %10 : vector<8x512xi32>
    %c0_i32_8 = arith.constant 0 : i32
    %12 = arith.index_cast %c0_i32_8 : i32 to index
    %c0_9 = arith.constant 0 : index
    %c0_10 = arith.constant 0 : index
    %13 = vector.load %arg1[%12, %c0_9, %c0_10] : memref<2x8x512xf32, #tpu.memory_space<vmem>>, vector<1x8x512xf32>
    %14 = vector.shape_cast %13 : vector<1x8x512xf32> to vector<8x512xf32>
    %cst = arith.constant 0.000000e+00 : f32
    %15 = vector.broadcast %cst : f32 to vector<8x512xf32>
    %c1_i32 = arith.constant 1 : i32
    %16 = tpu.dynamic_rotate %14 by %c1_i32 dim 1 : vector<8x512xf32>, i32 -> vector<8x512xf32>
    %17 = arith.select %9, %16, %15 : vector<8x512xi1>, vector<8x512xf32>
    %c511_i32_11 = arith.constant 511 : i32
    %18 = tpu.dynamic_rotate %14 by %c511_i32_11 dim 1 : vector<8x512xf32>, i32 -> vector<8x512xf32>
    %19 = arith.select %11, %18, %15 : vector<8x512xi1>, vector<8x512xf32>
    %cst_12 = arith.constant dense<0.000000e+00> : vector<8x512xf32>
    %20 = tpu.matmul %3, %14, %cst_12 {dimension_numbers = #tpu.dot_dimension_numbers<[1], [0], [0], [1], [0, 0, 1, 1], [], []>} : vector<8x8xf32>, vector<8x512xf32>, vector<8x512xf32> -> vector<8x512xf32>
    %cst_13 = arith.constant dense<0.000000e+00> : vector<8x512xf32>
    %21 = tpu.matmul %1, %17, %cst_13 {dimension_numbers = #tpu.dot_dimension_numbers<[1], [0], [0], [1], [0, 0, 1, 1], [], []>} : vector<8x8xf32>, vector<8x512xf32>, vector<8x512xf32> -> vector<8x512xf32>
    %22 = arith.addf %20, %21 : vector<8x512xf32>
    %cst_14 = arith.constant dense<0.000000e+00> : vector<8x512xf32>
    %23 = tpu.matmul %5, %19, %cst_14 {dimension_numbers = #tpu.dot_dimension_numbers<[1], [0], [0], [1], [0, 0, 1, 1], [], []>} : vector<8x8xf32>, vector<8x512xf32>, vector<8x512xf32> -> vector<8x512xf32>
    %24 = arith.addf %22, %23 : vector<8x512xf32>
    %25 = vector.broadcast %6 : vector<8x1xf32> to vector<8x512xf32>
    %26 = arith.addf %24, %25 : vector<8x512xf32>
    %27 = arith.index_cast %c0_i32_8 : i32 to index
    %c0_15 = arith.constant 0 : index
    %c0_16 = arith.constant 0 : index
    %28 = vector.load %arg4[%27, %c0_15, %c0_16] : memref<2x8x512xf32, #tpu.memory_space<vmem>>, vector<1x8x512xf32>
    %29 = vector.shape_cast %28 : vector<1x8x512xf32> to vector<8x512xf32>
    %30 = vector.shape_cast %26 : vector<8x512xf32> to vector<1x8x512xf32>
    tpu.vector_store %arg4[%27, %c0_15, %c0_16], %30 {strides = array<i32>} : memref<2x8x512xf32, #tpu.memory_space<vmem>>, vector<1x8x512xf32>,
    %c1_i32_17 = arith.constant 1 : i32
    %31 = arith.index_cast %c1_i32_17 : i32 to index
    %c0_18 = arith.constant 0 : index
    %c0_19 = arith.constant 0 : index
    %32 = vector.load %arg1[%31, %c0_18, %c0_19] : memref<2x8x512xf32, #tpu.memory_space<vmem>>, vector<1x8x512xf32>
    %33 = vector.shape_cast %32 : vector<1x8x512xf32> to vector<8x512xf32>
    %cst_20 = arith.constant 0.000000e+00 : f32
    %34 = vector.broadcast %cst_20 : f32 to vector<8x512xf32>
    %c1_i32_21 = arith.constant 1 : i32
    %35 = tpu.dynamic_rotate %33 by %c1_i32_21 dim 1 : vector<8x512xf32>, i32 -> vector<8x512xf32>
    %36 = arith.select %9, %35, %34 : vector<8x512xi1>, vector<8x512xf32>
    %c511_i32_22 = arith.constant 511 : i32
    %37 = tpu.dynamic_rotate %33 by %c511_i32_22 dim 1 : vector<8x512xf32>, i32 -> vector<8x512xf32>
    %38 = arith.select %11, %37, %34 : vector<8x512xi1>, vector<8x512xf32>
    %cst_23 = arith.constant dense<0.000000e+00> : vector<8x512xf32>
    %39 = tpu.matmul %3, %33, %cst_23 {dimension_numbers = #tpu.dot_dimension_numbers<[1], [0], [0], [1], [0, 0, 1, 1], [], []>} : vector<8x8xf32>, vector<8x512xf32>, vector<8x512xf32> -> vector<8x512xf32>
    %cst_24 = arith.constant dense<0.000000e+00> : vector<8x512xf32>
    %40 = tpu.matmul %1, %36, %cst_24 {dimension_numbers = #tpu.dot_dimension_numbers<[1], [0], [0], [1], [0, 0, 1, 1], [], []>} : vector<8x8xf32>, vector<8x512xf32>, vector<8x512xf32> -> vector<8x512xf32>
    %41 = arith.addf %39, %40 : vector<8x512xf32>
    %cst_25 = arith.constant dense<0.000000e+00> : vector<8x512xf32>
    %42 = tpu.matmul %5, %38, %cst_25 {dimension_numbers = #tpu.dot_dimension_numbers<[1], [0], [0], [1], [0, 0, 1, 1], [], []>} : vector<8x8xf32>, vector<8x512xf32>, vector<8x512xf32> -> vector<8x512xf32>
    %43 = arith.addf %41, %42 : vector<8x512xf32>
    %44 = vector.broadcast %6 : vector<8x1xf32> to vector<8x512xf32>
    %45 = arith.addf %43, %44 : vector<8x512xf32>
    %46 = arith.index_cast %c1_i32_17 : i32 to index
    %c0_26 = arith.constant 0 : index
    %c0_27 = arith.constant 0 : index
    %47 = vector.load %arg4[%46, %c0_26, %c0_27] : memref<2x8x512xf32, #tpu.memory_space<vmem>>, vector<1x8x512xf32>
    %48 = vector.shape_cast %47 : vector<1x8x512xf32> to vector<8x512xf32>
    %49 = vector.shape_cast %45 : vector<8x512xf32> to vector<1x8x512xf32>
    tpu.vector_store %arg4[%46, %c0_26, %c0_27], %49 {strides = array<i32>} : memref<2x8x512xf32, #tpu.memory_space<vmem>>, vector<1x8x512xf32>,
    %c2_i32 = arith.constant 2 : i32
    return
  }
  func.func @transform_0(%arg0: i32) -> (i32, i32, i32) {
    %c0_i32 = arith.constant 0 : i32
    %c0_i32_0 = arith.constant 0 : i32
    %c0_i32_1 = arith.constant 0 : i32
    return %arg0, %c0_i32, %c0_i32_0 : i32, i32, i32
  }
  func.func @transform_1(%arg0: i32) -> (i32, i32, i32) {
    %c0_i32 = arith.constant 0 : i32
    %c0_i32_0 = arith.constant 0 : i32
    %c0_i32_1 = arith.constant 0 : i32
    %c0_i32_2 = arith.constant 0 : i32
    return %c0_i32, %c0_i32_0, %c0_i32_1 : i32, i32, i32
  }
  func.func @transform_2(%arg0: i32) -> (i32, i32) {
    %c0_i32 = arith.constant 0 : i32
    %c0_i32_0 = arith.constant 0 : i32
    %c0_i32_1 = arith.constant 0 : i32
    return %c0_i32, %c0_i32_0 : i32, i32
  }
  func.func @transform_3(%arg0: i32) -> (i32, i32, i32) {
    %c0_i32 = arith.constant 0 : i32
    %c0_i32_0 = arith.constant 0 : i32
    %c0_i32_1 = arith.constant 0 : i32
    return %arg0, %c0_i32, %c0_i32_0 : i32, i32, i32
  }
}

</mosaic_0001>

<llo_original>
// kernel: tpu_custom_call.1
$region0: #{tpu_custom_call.1}
  #allocation0 [shape = 'u32[]', space=smem, size = 0x4, offset = 0x4, fixed_abs, tag = 'smem constant byte address 0x4 - core index']
  #allocation1 [shape = 'u32[72,128]{1,0:T(1,128)}', space=vmem, size = 0x9000, scoped, tag = 'internal scratch']
  %s0 = inlined_call_operand.hbm [shape: f32[4,8,512], index: 0, kind: input, shape index: {}]
  %s1 = inlined_call_operand.hbm [shape: f32[3,8,8], index: 1, kind: input, shape index: {}]
  %s2 = inlined_call_operand.vmem [shape: f32[8,1], index: 2, kind: input, shape index: {}]
  %s3 = inlined_call_operand.hbm [shape: f32[4,8,512], index: 3, kind: output, shape index: {}]
  %s4 = sld [smem:[#allocation0]]
  $region53: #{tpu_custom_call.1} parent=0
    _
  %s6 = ssub.s32 1, %s4
  %s7 = scalar_select 0, %s6, %s4
  $region1: #{tpu_custom_call.1} parent=0
    #allocation2 [shape = 'u8[65536]{0}', space=vmem, size = 0x10000, scoped, tag = 'input window, operand 0']
    #allocation3 [shape = 's32[2]{0}', space=sflag, size = 0x8, scoped, tag = 'scoped memory for tpu_custom_call.1']
    #allocation4 [shape = 's32[2]{0}', space=sflag, size = 0x8, scoped, tag = 'scoped memory for tpu_custom_call.1']
    #allocation5 [shape = 'u8[12288]{0}', space=vmem, size = 0x3000, scoped, tag = 'input window, operand 1, single buffered']
    #allocation6 [shape = 's32[1]{0}', space=sflag, size = 0x4, scoped, tag = 'scoped memory for tpu_custom_call.1']
    #allocation7 [shape = 'u8[65536]{0}', space=vmem, size = 0x10000, scoped, tag = 'output window, operand 0']
    %8 = vsyncpa [#allocation3], 0
    %s9 = scalar_lea.sflag [#allocation3], 1
    %10 = vsyncpa %s9, 0
    %11 = vsyncpa [#allocation6], 0
    %12 = vsyncpa [#allocation4], 0
    %s13 = scalar_lea.sflag [#allocation4], 1
    %14 = vsyncpa %s13, 0
    loop: start=0, step=1, limit=4
    $region2: #{tpu_custom_call.1} parent=1 // loop_pre_header
      _
    $region3: #{tpu_custom_call.1} parent=1 // loop_header
      %s16 = sphi 0, %s20
      %p17 = scmp.ge.s32.totalorder %s16, 4
      %s26 = sphi 0, %s28
      %s29 = sphi 0, %s26
      %s30 = sphi 0, %s29
      %s46 = sphi 0, %s30
      %s50 = sphi 0, %s50
      %s52 = sphi 0, %s50
      %s53 = sphi 0, %s52
      %s67 = sphi 0, %s53
      %s71 = sphi 0, %s71
      %s73 = sphi 0, %s71
      %s74 = sphi 0, %s73
      %s88 = sphi 0, %s74
      %s94 = sphi 0, %s96
      %s97 = sphi 0, %s94
      %s98 = sphi 0, %s97
      %s114 = sphi 0, %s98
    $region4: #{tpu_custom_call.1} parent=1 // loop_header_branch
      %19 = sbr.rel (%p17) target = $region8
    $region5: #{tpu_custom_call.1} parent=1 // loop_body
      %s21 = ssub.s32 %s16, 1
      %s22 = ssub.s32 %s16, 2
      %s23 = sadd.s32 %s16, 1
      %s24 = ssub.s32 %s16, %s23
      %p25 = scmp.eq.s32.totalorder %s24, 0
      %s27 = sadd.s32 %s26, 1
      %s28 = scalar_select %p25, %s26, %s27
      %p31 = pneg %p25
      %p32 = scmp.eq.s32.totalorder %s16, 1
      %p33 = por %p31, %p32
      %p34 = scmp.ne.s32.totalorder %s26, %s29
      %p35 = scmp.eq.s32.totalorder %s16, 0
      %p36 = por %p34, %p35
      %p37 = scmp.ne.s32.totalorder %s26, %s29
      %p38 = scmp.eq.s32.totalorder %s21, 1
      %p39 = por %p37, %p38
      %p40 = scmp.ne.s32.totalorder %s29, %s30
      %p41 = scmp.eq.s32.totalorder %s21, 0
      %p42 = por %p40, %p41
      %p43 = scmp.ne.s32.totalorder %s29, %s30
      %p44 = scmp.eq.s32.totalorder %s22, 1
      %p45 = por %p43, %p44
      %p47 = scmp.ne.s32.totalorder %s30, %s46
      %p48 = scmp.eq.s32.totalorder %s22, 0
      %p49 = por %p47, %p48
      %s51 = sadd.s32 %s50, 1
      %p54 = scmp.eq.s32.totalorder %s16, 1
      %p55 = scmp.ne.s32.totalorder %s50, %s52
      %p56 = scmp.eq.s32.totalorder %s16, 0
      %p57 = por %p55, %p56
      %p58 = scmp.ne.s32.totalorder %s50, %s52
      %p59 = scmp.eq.s32.totalorder %s21, 1
      %p60 = por %p58, %p59
      %p61 = scmp.ne.s32.totalorder %s52, %s53
      %p62 = scmp.eq.s32.totalorder %s21, 0
      %p63 = por %p61, %p62
      %p64 = scmp.ne.s32.totalorder %s52, %s53
      %p65 = scmp.eq.s32.totalorder %s22, 1
      %p66 = por %p64, %p65
      %p68 = scmp.ne.s32.totalorder %s53, %s67
      %p69 = scmp.eq.s32.totalorder %s22, 0
      %p70 = por %p68, %p69
      %s72 = sadd.s32 %s71, 1
      %p75 = scmp.eq.s32.totalorder %s16, 1
      %p76 = scmp.ne.s32.totalorder %s71, %s73
      %p77 = scmp.eq.s32.totalorder %s16, 0
      %p78 = por %p76, %p77
      %p79 = scmp.ne.s32.totalorder %s71, %s73
      %p80 = scmp.eq.s32.totalorder %s21, 1
      %p81 = por %p79, %p80
      %p82 = scmp.ne.s32.totalorder %s73, %s74
      %p83 = scmp.eq.s32.totalorder %s21, 0
      %p84 = por %p82, %p83
      %p85 = scmp.ne.s32.totalorder %s73, %s74
      %p86 = scmp.eq.s32.totalorder %s22, 1
      %p87 = por %p85, %p86
      %p89 = scmp.ne.s32.totalorder %s74, %s88
      %p90 = scmp.eq.s32.totalorder %s22, 0
      %p91 = por %p89, %p90
      %s92 = ssub.s32 %s16, %s23
      %p93 = scmp.eq.s32.totalorder %s92, 0
      %s95 = sadd.s32 %s94, 1
      %s96 = scalar_select %p93, %s94, %s95
      %p99 = pneg %p93
      %p100 = scmp.eq.s32.totalorder %s16, 1
      %p101 = por %p99, %p100
      %p102 = scmp.ne.s32.totalorder %s94, %s97
      %p103 = scmp.eq.s32.totalorder %s16, 0
      %p104 = por %p102, %p103
      %p105 = scmp.ne.s32.totalorder %s94, %s97
      %p106 = scmp.eq.s32.totalorder %s21, 1
      %p107 = por %p105, %p106
      %p108 = scmp.ne.s32.totalorder %s97, %s98
      %p109 = scmp.eq.s32.totalorder %s21, 0
      %p110 = por %p108, %p109
      %p111 = scmp.ne.s32.totalorder %s97, %s98
      %p112 = scmp.eq.s32.totalorder %s22, 1
      %p113 = por %p111, %p112
      %p115 = scmp.ne.s32.totalorder %s98, %s114
      %p116 = scmp.eq.s32.totalorder %s22, 0
      %p117 = por %p115, %p116
      %p118 = scmp.le.s32.totalorder 1, %s16
      %p119 = scmp.lt.s32.totalorder %s16, 3
      %p120 = pnand %p118, %p119
      %p121 = pneg %p120
      // Predicated region
      $region9: #{tpu_custom_call.1} parent=5 // pred_check
        _
      $region10: #{tpu_custom_call.1} parent=5 // pred_check_branch
        %123 = sbr.rel (%p120) target = $region12
      $region11: #{tpu_custom_call.1} parent=5 // pred_region
        %s124 = ssub.s32 %s16, 1
        // Predicated region
        $region13: #{tpu_custom_call.1} parent=11 // pred_check
          %p125 = pneg %p63
        $region14: #{tpu_custom_call.1} parent=11 // pred_check_branch
          %127 = sbr.rel (%p125) target = $region16
        $region15: #{tpu_custom_call.1} parent=11 // pred_region
          %129 = vsyncadd [#allocation6], 0
          %s130 = sshll.u32 %s1, 4
          %s131 = int_to_ptr.hbm [resolvable:$true] %s130
          %s132 = sshll.u32 [#allocation5], 4
          %s133 = int_to_ptr.vmem [resolvable:$true] %s132
          %138 = dma.hbm_to_vmem [thread:$0]  %s131, 384, %s133, [#allocation6], 128, 128, 8
        $region16: #{tpu_custom_call.1} parent=11 // pred_fallthru
          _
        // Predicated region
        $region17: #{tpu_custom_call.1} parent=11 // pred_check
          %p139 = pneg %p84
        $region18: #{tpu_custom_call.1} parent=11 // pred_check_branch
          %141 = sbr.rel (%p139) target = $region20
        $region19: #{tpu_custom_call.1} parent=11 // pred_region
          _
        $region20: #{tpu_custom_call.1} parent=11 // pred_fallthru
          _
      $region12: #{tpu_custom_call.1} parent=5 // pred_fallthru
        _
      %p142 = scmp.lt.s32.totalorder %s16, 2
      // Predicated region
      $region21: #{tpu_custom_call.1} parent=5 // pred_check
        %p143 = pneg %p142
      $region22: #{tpu_custom_call.1} parent=5 // pred_check_branch
        %145 = sbr.rel (%p143) target = $region24
      $region23: #{tpu_custom_call.1} parent=5 // pred_region
        // Predicated region
        $region25: #{tpu_custom_call.1} parent=23 // pred_check
          %p146 = pneg %p36
        $region26: #{tpu_custom_call.1} parent=23 // pred_check_branch
          %148 = sbr.rel (%p146) target = $region28
        $region27: #{tpu_custom_call.1} parent=23 // pred_region
          %s149 = sand.u32 %s26, 1
          %s150 = scalar_lea.sflag [#allocation3], %s149
          %s151 = sand.u32 %s26, 1
          %s152 = smul.addr %s151, 64
          %s153 = scalar_lea.vmem [#allocation2], %s152
          %s154 = smul.u32 2, %s16
          %156 = vsyncadd %s150, 0
          %s157 = smul.addr %s154, 4
          %s158 = smul.addr %s157, 8
          %s159 = scalar_lea.hbm %s0, %s158
          %s160 = sshll.u32 %s159, 4
          %s161 = int_to_ptr.hbm [resolvable:$true] %s160
          %s162 = sshll.u32 %s153, 4
          %s163 = int_to_ptr.vmem [resolvable:$true] %s162
          %168 = dma.hbm_to_vmem [thread:$0]  %s161, 1024, %s163, %s150, 512, 512, 32
        $region28: #{tpu_custom_call.1} parent=23 // pred_fallthru
          _
      $region24: #{tpu_custom_call.1} parent=5 // pred_fallthru
        _
      %p169 = scmp.le.s32.totalorder 1, %s16
      %p170 = scmp.lt.s32.totalorder %s16, 3
      %p171 = pnand %p169, %p170
      %p172 = pneg %p171
      // Predicated region
      $region29: #{tpu_custom_call.1} parent=5 // pred_check
        _
      $region30: #{tpu_custom_call.1} parent=5 // pred_check_branch
        %174 = sbr.rel (%p171) target = $region32
      $region31: #{tpu_custom_call.1} parent=5 // pred_region
        %s175 = ssub.s32 %s16, 1
        %s176 = sand.u32 %s29, 1
        %s177 = scalar_lea.sflag [#allocation3], %s176
        %s178 = sand.u32 %s29, 1
        %s179 = smul.addr %s178, 64
        %s180 = scalar_lea.vmem [#allocation2], %s179
        // Predicated region
        $region33: #{tpu_custom_call.1} parent=31 // pred_check
          %p181 = pneg %p42
        $region34: #{tpu_custom_call.1} parent=31 // pred_check_branch
          %183 = sbr.rel (%p181) target = $region36
        $region35: #{tpu_custom_call.1} parent=31 // pred_region
          %185 = dma.done %s177, 1024
        $region36: #{tpu_custom_call.1} parent=31 // pred_fallthru
          _
        // Predicated region
        $region37: #{tpu_custom_call.1} parent=31 // pred_check
          %p186 = pneg %p63
        $region38: #{tpu_custom_call.1} parent=31 // pred_check_branch
          %188 = sbr.rel (%p186) target = $region40
        $region39: #{tpu_custom_call.1} parent=31 // pred_region
          %190 = dma.done [#allocation6], 384
        $region40: #{tpu_custom_call.1} parent=31 // pred_fallthru
          _
        %s191 = sand.u32 %s29, 1
        %s192 = scalar_lea.sflag [#allocation3], %s191
        %s193 = sand.u32 %s29, 1
        %s194 = smul.addr %s193, 64
        %s195 = scalar_lea.vmem [#allocation2], %s194
        %p196 = pneg %p42
        %p197 = pneg %p39
        %p198 = pneg %p63
        %p199 = pneg %p60
        %p200 = pneg %p84
        %p201 = pneg %p81
        %p202 = pneg %p110
        %p203 = pneg %p107
        %s204 = sand.u32 %s97, 1
        %s205 = scalar_lea.sflag [#allocation4], %s204
        %s206 = sand.u32 %s97, 1
        %s207 = smul.addr %s206, 64
        %s208 = scalar_lea.vmem [#allocation7], %s207
        %s209 = smul.u32 2, %s21
        %s210 = smul.u32 2, %s21
        %v211 = vld [vmem:[#allocation5] sm:$0xff]
        %s212 = scalar_lea.vmem [#allocation5], 8
        %v213 = vld [vmem:[%s212] sm:$0xff]
        %s214 = scalar_lea.vmem [#allocation5], 16
        %v215 = vld [vmem:[%s214] sm:$0xff]
        %v216 = vld [vmem:[%s2] sm:$0xff]
        %v217 = vlaneseq
        %v218 = vand.u32 %v217, 127
        %v219 = vadd.s32 %v218, 128
        %v220 = vadd.s32 %v218, 256
        %v221 = vadd.s32 %v218, 384
        %vm222 = vcmp.ne.s32.totalorder %v218, 0
        %vm223 = vcmp.ne.s32.totalorder %v219, 0
        %vm224 = vcmp.ne.s32.totalorder %v220, 0
        %vm225 = vcmp.ne.s32.totalorder %v221, 0
        %vm226 = vcmp.ne.s32.totalorder %v218, 511
        %vm227 = vcmp.ne.s32.totalorder %v219, 511
        %vm228 = vcmp.ne.s32.totalorder %v220, 511
        %vm229 = vcmp.ne.s32.totalorder %v221, 511
        %v230 = vld [vmem:[%s180] sm:$0xff]
        %v231 = vld [vmem:[%s180 + $0x8] sm:$0xff]
        %v232 = vld [vmem:[%s180 + $0x10] sm:$0xff]
        %v233 = vld [vmem:[%s180 + $0x18] sm:$0xff]
        %234 = vrot.lane.b32.xlu0 %v230, 1
        %v235 = vpop.permute.xlu0 %234
        %236 = vrot.lane.b32.xlu0 %v231, 1
        %v237 = vpop.permute.xlu0 %236
        %238 = vrot.lane.b32.xlu0 %v232, 1
        %v239 = vpop.permute.xlu0 %238
        %240 = vrot.lane.b32.xlu0 %v233, 1
        %v241 = vpop.permute.xlu0 %240
        %vm242 = vcmp.lt.s32.totalorder %v218, 1
        %v243 = vsel %vm242, %v239, %v241
        %v244 = vsel %vm242, %v237, %v239
        %v245 = vsel %vm242, %v235, %v237
        %v246 = vsel %vm242, %v241, %v235
        %v247 = vsel %vm222, %v246, 0.0
        %v248 = vsel %vm223, %v245, 0.0
        %v249 = vsel %vm224, %v244, 0.0
        %v250 = vsel %vm225, %v243, 0.0
        %251 = vrot.lane.b32.xlu0 %v230, 127
        %v252 = vpop.permute.xlu0 %251
        %253 = vrot.lane.b32.xlu0 %v231, 127
        %v254 = vpop.permute.xlu0 %253
        %255 = vrot.lane.b32.xlu0 %v232, 127
        %v256 = vpop.permute.xlu0 %255
        %257 = vrot.lane.b32.xlu0 %v233, 127
        %v258 = vpop.permute.xlu0 %257
        %vm259 = vcmp.lt.s32.totalorder %v218, 127
        %v260 = vsel %vm259, %v256, %v258
        %v261 = vsel %vm259, %v254, %v256
        %v262 = vsel %vm259, %v252, %v254
        %v263 = vsel %vm259, %v258, %v252
        %v264 = vsel %vm226, %v262, 0.0
        %v265 = vsel %vm227, %v261, 0.0
        %v266 = vsel %vm228, %v260, 0.0
        %v267 = vsel %vm229, %v263, 0.0
        %vm268 = vcmask 64512
        %v270 = vsel %vm268, %v211, 0
        %272 = vmatpush.msra.mxu0 0.0
        %273 = vmatpush.msra.mxu0 0.0
        %274 = vmatpush.msra.mxu0 0.0
        %275 = vmatpush.msra.mxu0 0.0
        %276 = vmatpush.msra.mxu0 0.0
        %277 = vmatpush.msra.mxu0 0.0
        %278 = vmatpush.msra.mxu0 0.0
        %279 = vmatpush.msra.mxu0 0.0
        %280 = vmatpush.msra.mxu0 0.0
        %281 = vmatpush.msra.mxu0 0.0
        %282 = vmatpush.msra.mxu0 0.0
        %283 = vmatpush.msra.mxu0 0.0
        %284 = vmatpush.msra.mxu0 0.0
        %285 = vmatpush.msra.mxu0 0.0
        %286 = vmatpush.msra.mxu0 0.0
        %287 = vmatpush.msra.mxu0 %v247
        %288 = vmatmul.f32.gmra.mxu0 %v270
        %v289 = vpop.f32.mrf.mxu0
        %v290 = vadd.f32 0.0, %v289
        %291 = vdwg.mxu0
        %292 = vmatpush.msra.mxu0 0.0
        %293 = vmatpush.msra.mxu0 0.0
        %294 = vmatpush.msra.mxu0 0.0
        %295 = vmatpush.msra.mxu0 0.0
        %296 = vmatpush.msra.mxu0 0.0
        %297 = vmatpush.msra.mxu0 0.0
        %298 = vmatpush.msra.mxu0 0.0
        %299 = vmatpush.msra.mxu0 0.0
        %300 = vmatpush.msra.mxu0 0.0
        %301 = vmatpush.msra.mxu0 0.0
        %302 = vmatpush.msra.mxu0 0.0
        %303 = vmatpush.msra.mxu0 0.0
        %304 = vmatpush.msra.mxu0 0.0
        %305 = vmatpush.msra.mxu0 0.0
        %306 = vmatpush.msra.mxu0 0.0
        %307 = vmatpush.msra.mxu0 %v248
        %308 = vmatmul.f32.gmra.mxu0 %v270
        %v309 = vpop.f32.mrf.mxu0
        %v310 = vadd.f32 0.0, %v309
        %311 = vdwg.mxu0
        %312 = vmatpush.msra.mxu0 0.0
        %313 = vmatpush.msra.mxu0 0.0
        %314 = vmatpush.msra.mxu0 0.0
        %315 = vmatpush.msra.mxu0 0.0
        %316 = vmatpush.msra.mxu0 0.0
        %317 = vmatpush.msra.mxu0 0.0
        %318 = vmatpush.msra.mxu0 0.0
        %319 = vmatpush.msra.mxu0 0.0
        %320 = vmatpush.msra.mxu0 0.0
        %321 = vmatpush.msra.mxu0 0.0
        %322 = vmatpush.msra.mxu0 0.0
        %323 = vmatpush.msra.mxu0 0.0
        %324 = vmatpush.msra.mxu0 0.0
        %325 = vmatpush.msra.mxu0 0.0
        %326 = vmatpush.msra.mxu0 0.0
        %327 = vmatpush.msra.mxu0 %v249
        %328 = vmatmul.f32.gmra.mxu0 %v270
        %v329 = vpop.f32.mrf.mxu0
        %v330 = vadd.f32 0.0, %v329
        %331 = vdwg.mxu0
        %332 = vmatpush.msra.mxu0 0.0
        %333 = vmatpush.msra.mxu0 0.0
        %334 = vmatpush.msra.mxu0 0.0
        %335 = vmatpush.msra.mxu0 0.0
        %336 = vmatpush.msra.mxu0 0.0
        %337 = vmatpush.msra.mxu0 0.0
        %338 = vmatpush.msra.mxu0 0.0
        %339 = vmatpush.msra.mxu0 0.0
        %340 = vmatpush.msra.mxu0 0.0
        %341 = vmatpush.msra.mxu0 0.0
        %342 = vmatpush.msra.mxu0 0.0
        %343 = vmatpush.msra.mxu0 0.0
        %344 = vmatpush.msra.mxu0 0.0
        %345 = vmatpush.msra.mxu0 0.0
        %346 = vmatpush.msra.mxu0 0.0
        %347 = vmatpush.msra.mxu0 %v250
        %348 = vmatmul.f32.gmra.mxu0 %v270
        %v349 = vpop.f32.mrf.mxu0
        %v350 = vadd.f32 0.0, %v349
        %351 = vdwg.mxu0
        %v353 = vsel %vm268, %v213, 0
        %355 = vmatpush.msra.mxu0 0.0
        %356 = vmatpush.msra.mxu0 0.0
        %357 = vmatpush.msra.mxu0 0.0
        %358 = vmatpush.msra.mxu0 0.0
        %359 = vmatpush.msra.mxu0 0.0
        %360 = vmatpush.msra.mxu0 0.0
        %361 = vmatpush.msra.mxu0 0.0
        %362 = vmatpush.msra.mxu0 0.0
        %363 = vmatpush.msra.mxu0 0.0
        %364 = vmatpush.msra.mxu0 0.0
        %365 = vmatpush.msra.mxu0 0.0
        %366 = vmatpush.msra.mxu0 0.0
        %367 = vmatpush.msra.mxu0 0.0
        %368 = vmatpush.msra.mxu0 0.0
        %369 = vmatpush.msra.mxu0 0.0
        %370 = vmatpush.msra.mxu0 %v230
        %371 = vmatmul.f32.gmra.mxu0 %v353
        %v372 = vpop.f32.mrf.mxu0
        %v373 = vadd.f32 %v290, %v372
        %374 = vdwg.mxu0
        %375 = vmatpush.msra.mxu0 0.0
        %376 = vmatpush.msra.mxu0 0.0
        %377 = vmatpush.msra.mxu0 0.0
        %378 = vmatpush.msra.mxu0 0.0
        %379 = vmatpush.msra.mxu0 0.0
        %380 = vmatpush.msra.mxu0 0.0
        %381 = vmatpush.msra.mxu0 0.0
        %382 = vmatpush.msra.mxu0 0.0
        %383 = vmatpush.msra.mxu0 0.0
        %384 = vmatpush.msra.mxu0 0.0
        %385 = vmatpush.msra.mxu0 0.0
        %386 = vmatpush.msra.mxu0 0.0
        %387 = vmatpush.msra.mxu0 0.0
        %388 = vmatpush.msra.mxu0 0.0
        %389 = vmatpush.msra.mxu0 0.0
        %390 = vmatpush.msra.mxu0 %v231
        %391 = vmatmul.f32.gmra.mxu0 %v353
        %v392 = vpop.f32.mrf.mxu0
        %v393 = vadd.f32 %v310, %v392
        %394 = vdwg.mxu0
        %395 = vmatpush.msra.mxu0 0.0
        %396 = vmatpush.msra.mxu0 0.0
        %397 = vmatpush.msra.mxu0 0.0
        %398 = vmatpush.msra.mxu0 0.0
        %399 = vmatpush.msra.mxu0 0.0
        %400 = vmatpush.msra.mxu0 0.0
        %401 = vmatpush.msra.mxu0 0.0
        %402 = vmatpush.msra.mxu0 0.0
        %403 = vmatpush.msra.mxu0 0.0
        %404 = vmatpush.msra.mxu0 0.0
        %405 = vmatpush.msra.mxu0 0.0
        %406 = vmatpush.msra.mxu0 0.0
        %407 = vmatpush.msra.mxu0 0.0
        %408 = vmatpush.msra.mxu0 0.0
        %409 = vmatpush.msra.mxu0 0.0
        %410 = vmatpush.msra.mxu0 %v232
        %411 = vmatmul.f32.gmra.mxu0 %v353
        %v412 = vpop.f32.mrf.mxu0
        %v413 = vadd.f32 %v330, %v412
        %414 = vdwg.mxu0
        %415 = vmatpush.msra.mxu0 0.0
        %416 = vmatpush.msra.mxu0 0.0
        %417 = vmatpush.msra.mxu0 0.0
        %418 = vmatpush.msra.mxu0 0.0
        %419 = vmatpush.msra.mxu0 0.0
        %420 = vmatpush.msra.mxu0 0.0
        %421 = vmatpush.msra.mxu0 0.0
        %422 = vmatpush.msra.mxu0 0.0
        %423 = vmatpush.msra.mxu0 0.0
        %424 = vmatpush.msra.mxu0 0.0
        %425 = vmatpush.msra.mxu0 0.0
        %426 = vmatpush.msra.mxu0 0.0
        %427 = vmatpush.msra.mxu0 0.0
        %428 = vmatpush.msra.mxu0 0.0
        %429 = vmatpush.msra.mxu0 0.0
        %430 = vmatpush.msra.mxu0 %v233
        %431 = vmatmul.f32.gmra.mxu0 %v353
        %v432 = vpop.f32.mrf.mxu0
        %v433 = vadd.f32 %v350, %v432
        %434 = vdwg.mxu0
        %v436 = vsel %vm268, %v215, 0
        %438 = vmatpush.msra.mxu0 0.0
        %439 = vmatpush.msra.mxu0 0.0
        %440 = vmatpush.msra.mxu0 0.0
        %441 = vmatpush.msra.mxu0 0.0
        %442 = vmatpush.msra.mxu0 0.0
        %443 = vmatpush.msra.mxu0 0.0
        %444 = vmatpush.msra.mxu0 0.0
        %445 = vmatpush.msra.mxu0 0.0
        %446 = vmatpush.msra.mxu0 0.0
        %447 = vmatpush.msra.mxu0 0.0
        %448 = vmatpush.msra.mxu0 0.0
        %449 = vmatpush.msra.mxu0 0.0
        %450 = vmatpush.msra.mxu0 0.0
        %451 = vmatpush.msra.mxu0 0.0
        %452 = vmatpush.msra.mxu0 0.0
        %453 = vmatpush.msra.mxu0 %v264
        %454 = vmatmul.f32.gmra.mxu0 %v436
        %v455 = vpop.f32.mrf.mxu0
        %v456 = vadd.f32 0.0, %v455
        %457 = vdwg.mxu0
        %458 = vmatpush.msra.mxu0 0.0
        %459 = vmatpush.msra.mxu0 0.0
        %460 = vmatpush.msra.mxu0 0.0
        %461 = vmatpush.msra.mxu0 0.0
        %462 = vmatpush.msra.mxu0 0.0
        %463 = vmatpush.msra.mxu0 0.0
        %464 = vmatpush.msra.mxu0 0.0
        %465 = vmatpush.msra.mxu0 0.0
        %466 = vmatpush.msra.mxu0 0.0
        %467 = vmatpush.msra.mxu0 0.0
        %468 = vmatpush.msra.mxu0 0.0
        %469 = vmatpush.msra.mxu0 0.0
        %470 = vmatpush.msra.mxu0 0.0
        %471 = vmatpush.msra.mxu0 0.0
        %472 = vmatpush.msra.mxu0 0.0
        %473 = vmatpush.msra.mxu0 %v265
        %474 = vmatmul.f32.gmra.mxu0 %v436
        %v475 = vpop.f32.mrf.mxu0
        %v476 = vadd.f32 0.0, %v475
        %477 = vdwg.mxu0
        %478 = vmatpush.msra.mxu0 0.0
        %479 = vmatpush.msra.mxu0 0.0
        %480 = vmatpush.msra.mxu0 0.0
        %481 = vmatpush.msra.mxu0 0.0
        %482 = vmatpush.msra.mxu0 0.0
        %483 = vmatpush.msra.mxu0 0.0
        %484 = vmatpush.msra.mxu0 0.0
        %485 = vmatpush.msra.mxu0 0.0
        %486 = vmatpush.msra.mxu0 0.0
        %487 = vmatpush.msra.mxu0 0.0
        %488 = vmatpush.msra.mxu0 0.0
        %489 = vmatpush.msra.mxu0 0.0
        %490 = vmatpush.msra.mxu0 0.0
        %491 = vmatpush.msra.mxu0 0.0
        %492 = vmatpush.msra.mxu0 0.0
        %493 = vmatpush.msra.mxu0 %v266
        %494 = vmatmul.f32.gmra.mxu0 %v436
        %v495 = vpop.f32.mrf.mxu0
        %v496 = vadd.f32 0.0, %v495
        %497 = vdwg.mxu0
        %498 = vmatpush.msra.mxu0 0.0
        %499 = vmatpush.msra.mxu0 0.0
        %500 = vmatpush.msra.mxu0 0.0
        %501 = vmatpush.msra.mxu0 0.0
        %502 = vmatpush.msra.mxu0 0.0
        %503 = vmatpush.msra.mxu0 0.0
        %504 = vmatpush.msra.mxu0 0.0
        %505 = vmatpush.msra.mxu0 0.0
        %506 = vmatpush.msra.mxu0 0.0
        %507 = vmatpush.msra.mxu0 0.0
        %508 = vmatpush.msra.mxu0 0.0
        %509 = vmatpush.msra.mxu0 0.0
        %510 = vmatpush.msra.mxu0 0.0
        %511 = vmatpush.msra.mxu0 0.0
        %512 = vmatpush.msra.mxu0 0.0
        %513 = vmatpush.msra.mxu0 %v267
        %514 = vmatmul.f32.gmra.mxu0 %v436
        %v515 = vpop.f32.mrf.mxu0
        %v516 = vadd.f32 0.0, %v515
        %517 = vdwg.mxu0
        %v518 = vadd.f32 %v373, %v456
        %v519 = vadd.f32 %v393, %v476
        %v520 = vadd.f32 %v413, %v496
        %v521 = vadd.f32 %v433, %v516
        %523 = vset.pattern.permute.xlu0 0
        %524 = vperm.xlu0 %523, %v216
        %v525 = vpop.permute.xlu0 %524
        %v527 = vadd.f32 %v518, %v525
        %v528 = vadd.f32 %v519, %v525
        %v529 = vadd.f32 %v520, %v525
        %v530 = vadd.f32 %v521, %v525
        %531 = vst [vmem:[%s208] sm:$0xff] %v527
        %532 = vst [vmem:[%s208 + $0x8] sm:$0xff] %v528
        %533 = vst [vmem:[%s208 + $0x10] sm:$0xff] %v529
        %534 = vst [vmem:[%s208 + $0x18] sm:$0xff] %v530
        %s535 = scalar_lea.vmem %s180, 32 [#allocation2]
        %v536 = vld [vmem:[%s535] sm:$0xff]
        %v537 = vld [vmem:[%s535 + $0x8] sm:$0xff]
        %v538 = vld [vmem:[%s535 + $0x10] sm:$0xff]
        %v539 = vld [vmem:[%s535 + $0x18] sm:$0xff]
        %540 = vrot.lane.b32.xlu0 %v536, 1
        %v541 = vpop.permute.xlu0 %540
        %542 = vrot.lane.b32.xlu0 %v537, 1
        %v543 = vpop.permute.xlu0 %542
        %544 = vrot.lane.b32.xlu0 %v538, 1
        %v545 = vpop.permute.xlu0 %544
        %546 = vrot.lane.b32.xlu0 %v539, 1
        %v547 = vpop.permute.xlu0 %546
        %v548 = vsel %vm242, %v545, %v547
        %v549 = vsel %vm242, %v543, %v545
        %v550 = vsel %vm242, %v541, %v543
        %v551 = vsel %vm242, %v547, %v541
        %v552 = vsel %vm222, %v551, 0.0
        %v553 = vsel %vm223, %v550, 0.0
        %v554 = vsel %vm224, %v549, 0.0
        %v555 = vsel %vm225, %v548, 0.0
        %556 = vrot.lane.b32.xlu0 %v536, 127
        %v557 = vpop.permute.xlu0 %556
        %558 = vrot.lane.b32.xlu0 %v537, 127
        %v559 = vpop.permute.xlu0 %558
        %560 = vrot.lane.b32.xlu0 %v538, 127
        %v561 = vpop.permute.xlu0 %560
        %562 = vrot.lane.b32.xlu0 %v539, 127
        %v563 = vpop.permute.xlu0 %562
        %v564 = vsel %vm259, %v561, %v563
        %v565 = vsel %vm259, %v559, %v561
        %v566 = vsel %vm259, %v557, %v559
        %v567 = vsel %vm259, %v563, %v557
        %v568 = vsel %vm226, %v566, 0.0
        %v569 = vsel %vm227, %v565, 0.0
        %v570 = vsel %vm228, %v564, 0.0
        %v571 = vsel %vm229, %v567, 0.0
        %572 = vmatpush.msra.mxu0 0.0
        %573 = vmatpush.msra.mxu0 0.0
        %574 = vmatpush.msra.mxu0 0.0
        %575 = vmatpush.msra.mxu0 0.0
        %576 = vmatpush.msra.mxu0 0.0
        %577 = vmatpush.msra.mxu0 0.0
        %578 = vmatpush.msra.mxu0 0.0
        %579 = vmatpush.msra.mxu0 0.0
        %580 = vmatpush.msra.mxu0 0.0
        %581 = vmatpush.msra.mxu0 0.0
        %582 = vmatpush.msra.mxu0 0.0
        %583 = vmatpush.msra.mxu0 0.0
        %584 = vmatpush.msra.mxu0 0.0
        %585 = vmatpush.msra.mxu0 0.0
        %586 = vmatpush.msra.mxu0 0.0
        %587 = vmatpush.msra.mxu0 %v552
        %588 = vmatmul.f32.gmra.mxu0 %v270
        %v589 = vpop.f32.mrf.mxu0
        %v590 = vadd.f32 0.0, %v589
        %591 = vdwg.mxu0
        %592 = vmatpush.msra.mxu0 0.0
        %593 = vmatpush.msra.mxu0 0.0
        %594 = vmatpush.msra.mxu0 0.0
        %595 = vmatpush.msra.mxu0 0.0
        %596 = vmatpush.msra.mxu0 0.0
        %597 = vmatpush.msra.mxu0 0.0
        %598 = vmatpush.msra.mxu0 0.0
        %599 = vmatpush.msra.mxu0 0.0
        %600 = vmatpush.msra.mxu0 0.0
        %601 = vmatpush.msra.mxu0 0.0
        %602 = vmatpush.msra.mxu0 0.0
        %603 = vmatpush.msra.mxu0 0.0
        %604 = vmatpush.msra.mxu0 0.0
        %605 = vmatpush.msra.mxu0 0.0
        %606 = vmatpush.msra.mxu0 0.0
        %607 = vmatpush.msra.mxu0 %v553
        %608 = vmatmul.f32.gmra.mxu0 %v270
        %v609 = vpop.f32.mrf.mxu0
        %v610 = vadd.f32 0.0, %v609
        %611 = vdwg.mxu0
        %612 = vmatpush.msra.mxu0 0.0
        %613 = vmatpush.msra.mxu0 0.0
        %614 = vmatpush.msra.mxu0 0.0
        %615 = vmatpush.msra.mxu0 0.0
        %616 = vmatpush.msra.mxu0 0.0
        %617 = vmatpush.msra.mxu0 0.0
        %618 = vmatpush.msra.mxu0 0.0
        %619 = vmatpush.msra.mxu0 0.0
        %620 = vmatpush.msra.mxu0 0.0
        %621 = vmatpush.msra.mxu0 0.0
        %622 = vmatpush.msra.mxu0 0.0
        %623 = vmatpush.msra.mxu0 0.0
        %624 = vmatpush.msra.mxu0 0.0
        %625 = vmatpush.msra.mxu0 0.0
        %626 = vmatpush.msra.mxu0 0.0
        %627 = vmatpush.msra.mxu0 %v554
        %628 = vmatmul.f32.gmra.mxu0 %v270
        %v629 = vpop.f32.mrf.mxu0
        %v630 = vadd.f32 0.0, %v629
        %631 = vdwg.mxu0
        %632 = vmatpush.msra.mxu0 0.0
        %633 = vmatpush.msra.mxu0 0.0
        %634 = vmatpush.msra.mxu0 0.0
        %635 = vmatpush.msra.mxu0 0.0
        %636 = vmatpush.msra.mxu0 0.0
        %637 = vmatpush.msra.mxu0 0.0
        %638 = vmatpush.msra.mxu0 0.0
        %639 = vmatpush.msra.mxu0 0.0
        %640 = vmatpush.msra.mxu0 0.0
        %641 = vmatpush.msra.mxu0 0.0
        %642 = vmatpush.msra.mxu0 0.0
        %643 = vmatpush.msra.mxu0 0.0
        %644 = vmatpush.msra.mxu0 0.0
        %645 = vmatpush.msra.mxu0 0.0
        %646 = vmatpush.msra.mxu0 0.0
        %647 = vmatpush.msra.mxu0 %v555
        %648 = vmatmul.f32.gmra.mxu0 %v270
        %v649 = vpop.f32.mrf.mxu0
        %v650 = vadd.f32 0.0, %v649
        %651 = vdwg.mxu0
        %652 = vmatpush.msra.mxu0 0.0
        %653 = vmatpush.msra.mxu0 0.0
        %654 = vmatpush.msra.mxu0 0.0
        %655 = vmatpush.msra.mxu0 0.0
        %656 = vmatpush.msra.mxu0 0.0
        %657 = vmatpush.msra.mxu0 0.0
        %658 = vmatpush.msra.mxu0 0.0
        %659 = vmatpush.msra.mxu0 0.0
        %660 = vmatpush.msra.mxu0 0.0
        %661 = vmatpush.msra.mxu0 0.0
        %662 = vmatpush.msra.mxu0 0.0
        %663 = vmatpush.msra.mxu0 0.0
        %664 = vmatpush.msra.mxu0 0.0
        %665 = vmatpush.msra.mxu0 0.0
        %666 = vmatpush.msra.mxu0 0.0
        %667 = vmatpush.msra.mxu0 %v536
        %668 = vmatmul.f32.gmra.mxu0 %v353
        %v669 = vpop.f32.mrf.mxu0
        %v670 = vadd.f32 %v590, %v669
        %671 = vdwg.mxu0
        %672 = vmatpush.msra.mxu0 0.0
        %673 = vmatpush.msra.mxu0 0.0
        %674 = vmatpush.msra.mxu0 0.0
        %675 = vmatpush.msra.mxu0 0.0
        %676 = vmatpush.msra.mxu0 0.0
        %677 = vmatpush.msra.mxu0 0.0
        %678 = vmatpush.msra.mxu0 0.0
        %679 = vmatpush.msra.mxu0 0.0
        %680 = vmatpush.msra.mxu0 0.0
        %681 = vmatpush.msra.mxu0 0.0
        %682 = vmatpush.msra.mxu0 0.0
        %683 = vmatpush.msra.mxu0 0.0
        %684 = vmatpush.msra.mxu0 0.0
        %685 = vmatpush.msra.mxu0 0.0
        %686 = vmatpush.msra.mxu0 0.0
        %687 = vmatpush.msra.mxu0 %v537
        %688 = vmatmul.f32.gmra.mxu0 %v353
        %v689 = vpop.f32.mrf.mxu0
        %v690 = vadd.f32 %v610, %v689
        %691 = vdwg.mxu0
        %692 = vmatpush.msra.mxu0 0.0
        %693 = vmatpush.msra.mxu0 0.0
        %694 = vmatpush.msra.mxu0 0.0
        %695 = vmatpush.msra.mxu0 0.0
        %696 = vmatpush.msra.mxu0 0.0
        %697 = vmatpush.msra.mxu0 0.0
        %698 = vmatpush.msra.mxu0 0.0
        %699 = vmatpush.msra.mxu0 0.0
        %700 = vmatpush.msra.mxu0 0.0
        %701 = vmatpush.msra.mxu0 0.0
        %702 = vmatpush.msra.mxu0 0.0
        %703 = vmatpush.msra.mxu0 0.0
        %704 = vmatpush.msra.mxu0 0.0
        %705 = vmatpush.msra.mxu0 0.0
        %706 = vmatpush.msra.mxu0 0.0
        %707 = vmatpush.msra.mxu0 %v538
        %708 = vmatmul.f32.gmra.mxu0 %v353
        %v709 = vpop.f32.mrf.mxu0
        %v710 = vadd.f32 %v630, %v709
        %711 = vdwg.mxu0
        %712 = vmatpush.msra.mxu0 0.0
        %713 = vmatpush.msra.mxu0 0.0
        %714 = vmatpush.msra.mxu0 0.0
        %715 = vmatpush.msra.mxu0 0.0
        %716 = vmatpush.msra.mxu0 0.0
        %717 = vmatpush.msra.mxu0 0.0
        %718 = vmatpush.msra.mxu0 0.0
        %719 = vmatpush.msra.mxu0 0.0
        %720 = vmatpush.msra.mxu0 0.0
        %721 = vmatpush.msra.mxu0 0.0
        %722 = vmatpush.msra.mxu0 0.0
        %723 = vmatpush.msra.mxu0 0.0
        %724 = vmatpush.msra.mxu0 0.0
        %725 = vmatpush.msra.mxu0 0.0
        %726 = vmatpush.msra.mxu0 0.0
        %727 = vmatpush.msra.mxu0 %v539
        %728 = vmatmul.f32.gmra.mxu0 %v353
        %v729 = vpop.f32.mrf.mxu0
        %v730 = vadd.f32 %v650, %v729
        %731 = vdwg.mxu0
        %732 = vmatpush.msra.mxu0 0.0
        %733 = vmatpush.msra.mxu0 0.0
        %734 = vmatpush.msra.mxu0 0.0
        %735 = vmatpush.msra.mxu0 0.0
        %736 = vmatpush.msra.mxu0 0.0
        %737 = vmatpush.msra.mxu0 0.0
        %738 = vmatpush.msra.mxu0 0.0
        %739 = vmatpush.msra.mxu0 0.0
        %740 = vmatpush.msra.mxu0 0.0
        %741 = vmatpush.msra.mxu0 0.0
        %742 = vmatpush.msra.mxu0 0.0
        %743 = vmatpush.msra.mxu0 0.0
        %744 = vmatpush.msra.mxu0 0.0
        %745 = vmatpush.msra.mxu0 0.0
        %746 = vmatpush.msra.mxu0 0.0
        %747 = vmatpush.msra.mxu0 %v568
        %748 = vmatmul.f32.gmra.mxu0 %v436
        %v749 = vpop.f32.mrf.mxu0
        %v750 = vadd.f32 0.0, %v749
        %751 = vdwg.mxu0
        %752 = vmatpush.msra.mxu0 0.0
        %753 = vmatpush.msra.mxu0 0.0
        %754 = vmatpush.msra.mxu0 0.0
        %755 = vmatpush.msra.mxu0 0.0
        %756 = vmatpush.msra.mxu0 0.0
        %757 = vmatpush.msra.mxu0 0.0
        %758 = vmatpush.msra.mxu0 0.0
        %759 = vmatpush.msra.mxu0 0.0
        %760 = vmatpush.msra.mxu0 0.0
        %761 = vmatpush.msra.mxu0 0.0
        %762 = vmatpush.msra.mxu0 0.0
        %763 = vmatpush.msra.mxu0 0.0
        %764 = vmatpush.msra.mxu0 0.0
        %765 = vmatpush.msra.mxu0 0.0
        %766 = vmatpush.msra.mxu0 0.0
        %767 = vmatpush.msra.mxu0 %v569
        %768 = vmatmul.f32.gmra.mxu0 %v436
        %v769 = vpop.f32.mrf.mxu0
        %v770 = vadd.f32 0.0, %v769
        %771 = vdwg.mxu0
        %772 = vmatpush.msra.mxu0 0.0
        %773 = vmatpush.msra.mxu0 0.0
        %774 = vmatpush.msra.mxu0 0.0
        %775 = vmatpush.msra.mxu0 0.0
        %776 = vmatpush.msra.mxu0 0.0
        %777 = vmatpush.msra.mxu0 0.0
        %778 = vmatpush.msra.mxu0 0.0
        %779 = vmatpush.msra.mxu0 0.0
        %780 = vmatpush.msra.mxu0 0.0
        %781 = vmatpush.msra.mxu0 0.0
        %782 = vmatpush.msra.mxu0 0.0
        %783 = vmatpush.msra.mxu0 0.0
        %784 = vmatpush.msra.mxu0 0.0
        %785 = vmatpush.msra.mxu0 0.0
        %786 = vmatpush.msra.mxu0 0.0
        %787 = vmatpush.msra.mxu0 %v570
        %788 = vmatmul.f32.gmra.mxu0 %v436
        %v789 = vpop.f32.mrf.mxu0
        %v790 = vadd.f32 0.0, %v789
        %791 = vdwg.mxu0
        %792 = vmatpush.msra.mxu0 0.0
        %793 = vmatpush.msra.mxu0 0.0
        %794 = vmatpush.msra.mxu0 0.0
        %795 = vmatpush.msra.mxu0 0.0
        %796 = vmatpush.msra.mxu0 0.0
        %797 = vmatpush.msra.mxu0 0.0
        %798 = vmatpush.msra.mxu0 0.0
        %799 = vmatpush.msra.mxu0 0.0
        %800 = vmatpush.msra.mxu0 0.0
        %801 = vmatpush.msra.mxu0 0.0
        %802 = vmatpush.msra.mxu0 0.0
        %803 = vmatpush.msra.mxu0 0.0
        %804 = vmatpush.msra.mxu0 0.0
        %805 = vmatpush.msra.mxu0 0.0
        %806 = vmatpush.msra.mxu0 0.0
        %807 = vmatpush.msra.mxu0 %v571
        %808 = vmatmul.f32.gmra.mxu0 %v436
        %v809 = vpop.f32.mrf.mxu0
        %v810 = vadd.f32 0.0, %v809
        %811 = vdwg.mxu0
        %v812 = vadd.f32 %v670, %v750
        %v813 = vadd.f32 %v690, %v770
        %v814 = vadd.f32 %v710, %v790
        %v815 = vadd.f32 %v730, %v810
        %v816 = vadd.f32 %v812, %v525
        %v817 = vadd.f32 %v813, %v525
        %v818 = vadd.f32 %v814, %v525
        %v819 = vadd.f32 %v815, %v525
        %s820 = scalar_lea.vmem %s208, 32 [#allocation7]
        %821 = vst [vmem:[%s820] sm:$0xff] %v816
        %822 = vst [vmem:[%s820 + $0x8] sm:$0xff] %v817
        %823 = vst [vmem:[%s820 + $0x10] sm:$0xff] %v818
        %824 = vst [vmem:[%s820 + $0x18] sm:$0xff] %v819
        %s825 = sand.u32 %s97, 1
        %s826 = scalar_lea.sflag [#allocation4], %s825
        %s827 = sand.u32 %s97, 1
        %s828 = smul.addr %s827, 64
        %s829 = scalar_lea.vmem [#allocation7], %s828
        // Predicated region
        $region41: #{tpu_custom_call.1} parent=31 // pred_check
          %p830 = pneg %p107
        $region42: #{tpu_custom_call.1} parent=31 // pred_check_branch
          %832 = sbr.rel (%p830) target = $region44
        $region43: #{tpu_custom_call.1} parent=31 // pred_region
          %s833 = smul.u32 2, %s21
          %835 = vsyncadd %s826, 0
          %s836 = smul.addr %s833, 4
          %s837 = smul.addr %s836, 8
          %s838 = scalar_lea.hbm %s3, %s837
          %s839 = sshll.u32 %s829, 4
          %s840 = int_to_ptr.vmem [resolvable:$true] %s839
          %s841 = sshll.u32 %s838, 4
          %s842 = int_to_ptr.hbm [resolvable:$true] %s841
          %847 = dma.vmem_to_hbm [thread:$0]  %s840, 1024, %s842, %s826, 512, 512, 32
        $region44: #{tpu_custom_call.1} parent=31 // pred_fallthru
          _
      $region32: #{tpu_custom_call.1} parent=5 // pred_fallthru
        _
      %p848 = scmp.le.s32.totalorder 2, %s16
      // Predicated region
      $region45: #{tpu_custom_call.1} parent=5 // pred_check
        %p849 = pneg %p848
      $region46: #{tpu_custom_call.1} parent=5 // pred_check_branch
        %851 = sbr.rel (%p849) target = $region48
      $region47: #{tpu_custom_call.1} parent=5 // pred_region
        %s852 = ssub.s32 %s16, 2
        // Predicated region
        $region49: #{tpu_custom_call.1} parent=47 // pred_check
          %p853 = pneg %p113
        $region50: #{tpu_custom_call.1} parent=47 // pred_check_branch
          %855 = sbr.rel (%p853) target = $region52
        $region51: #{tpu_custom_call.1} parent=47 // pred_region
          %s856 = sand.u32 %s98, 1
          %s857 = scalar_lea.sflag [#allocation4], %s856
          %s858 = sand.u32 %s98, 1
          %s859 = smul.addr %s858, 64
          %s860 = scalar_lea.vmem [#allocation7], %s859
          %862 = dma.done %s857, 1024
        $region52: #{tpu_custom_call.1} parent=47 // pred_fallthru
          _
      $region48: #{tpu_custom_call.1} parent=5 // pred_fallthru
        _
    $region6: #{tpu_custom_call.1} parent=1 // loop_footer
      %s20 = sadd.s32 1, %s16
    $region7: #{tpu_custom_call.1} parent=1 // loop_footer_branch
      %15 = sbr.rel target = $region3
    $region8: #{tpu_custom_call.1} parent=1 // loop_exit
      _
    %863 = vsyncpa [#allocation3], 1
    %s864 = scalar_lea.sflag [#allocation3], 1
    %865 = vsyncpa %s864, 1
    %866 = vsyncpa [#allocation6], 1
    %867 = vsyncpa [#allocation4], 1
    %s868 = scalar_lea.sflag [#allocation4], 1
    %869 = vsyncpa %s868, 1

</llo_original>
